<compile_context>
chip_gen: v5e
topology: v5e:2x2
jax: 0.10.0
libtpu: 0.0.40
codegen_flags: <defaults>
</compile_context>

<pallas_src>
import functools

import jax
import jax.numpy as jnp
from jax.experimental import pallas as pl
from jax.experimental.pallas import tpu as pltpu


def _gat_kernel(h2_ref, h3_ref, wbaug_ref, waug_ref, out_ref, *,
                num_leaf: int, dout: int, alpha: float):
    """One grid step == `block_b` batch elements, flattened to M = block_b*n1 rows.

    h2_ref    : (M, num_leaf*din)             node-major rows; leaves contiguous on lanes
    h3_ref    : (M, din)
    wbaug_ref : (num_leaf*din, num_leaf*dout + num_leaf)
                columns [0 : L*dout]          = block-diag(W, ..., W)
                columns [L*dout : L*dout + L] = block-diag(W @ a1, ..., W @ a1)
    waug_ref  : (din, dout + 1)               columns [0:dout] = W, column [dout] = W @ a2
    out_ref   : (M, dout)
    """
    ld = num_leaf * dout

    # --- one fused, lane-dense MXU pass per row family: projections + scores
    r2 = jnp.dot(h2_ref[...], wbaug_ref[...],
                 preferred_element_type=jnp.float32)           # (M, L*dout + L)
    r3 = jnp.dot(h3_ref[...], waug_ref[...],
                 preferred_element_type=jnp.float32)           # (M, dout + 1)

    wh2 = r2[:, :ld]                       # (M, L*dout)  projected leaf features
    s2 = r2[:, ld:ld + num_leaf]           # (M, L)       leaf scores  (wh2_leaf @ a1)
    wh3 = r3[:, :dout]                     # (M, dout)    projected node features
    s3 = r3[:, dout:dout + 1]              # (M, 1)       self score   (wh3 @ a2)

    # --- LeakyReLU(alpha) on e = s3 + [s3 | s2]  (include_self slot first)
    e_leaf = s3 + s2
    e_self = s3 + s3
    e_leaf = jnp.where(e_leaf > 0, e_leaf, alpha * e_leaf)
    e_self = jnp.where(e_self > 0, e_self, alpha * e_self)

    # --- softmax over the (num_leaf + 1) neighbourhood slots (per node)
    m = jnp.maximum(jnp.max(e_leaf, axis=-1, keepdims=True), e_self)
    p_leaf = jnp.exp(e_leaf - m)                               # (M, L)
    p_self = jnp.exp(e_self - m)                               # (M, 1)
    denom = p_self + jnp.sum(p_leaf, axis=-1, keepdims=True)
    inv = pl.reciprocal(denom, approx=True)                    # EUP (free slot)
    inv = inv * (2.0 - denom * inv)        # one Newton step -> full f32 accuracy
    att_self = p_self * inv                                    # (M, 1)
    att_leaf = p_leaf * inv                                    # (M, L)

    # --- weighted combine: h' = att0 * Wh3 + sum_l att_l * Wh2[leaf l]
    #     (static lane slices of ONE dense tile; tree sum, no serial add chain)
    terms = [att_self * wh3]
    for l in range(num_leaf):
        terms.append(att_leaf[:, l:l + 1] * wh2[:, l * dout:(l + 1) * dout])
    while len(terms) > 1:
        nxt = [terms[i] + terms[i + 1] for i in range(0, len(terms) - 1, 2)]
        if len(terms) % 2:
            nxt.append(terms[-1])
        terms = nxt
    hp = terms[0]                                              # (M, dout)

    # concat=True -> ELU(alpha=1).  The untaken exp branch is clamped so it can
    # never overflow; exp(x)-1 vs expm1 differs by ~1e-7 absolute in f32.
    out = jnp.where(hp > 0, hp, jnp.exp(jnp.minimum(hp, 0.0)) - 1.0)
    out_ref[...] = out.astype(out_ref.dtype)


def _pick_block_b(b: int, n1: int, target_rows: int = 2048) -> int:
    """Choose the batch block.

    Rules (per the perf review):
      * If the whole problem fits in one <= target_rows block, take a single
        step -- minimal per-step overhead; 'parallel' buys nothing on a
        single-TC v5e/v6e and one big step is also fine on v7x at tiny sizes.
      * Otherwise, among divisors d of b whose row block (d*n1) is <= target
        and a multiple of the 8-sublane tile, prefer the LARGEST d that still
        leaves >= 4 grid steps (>= 2 per TensorCore on v7x, keeping
        double-buffered pipelining on both cores), falling back to >= 2 steps,
        then to any valid divisor, then to the whole batch.
    """
    total_rows = b * n1
    if total_rows <= target_rows:
        return b
    best4 = best2 = best1 = None
    for d in range(1, b + 1):
        if b % d:
            continue
        rows = d * n1
        if rows > target_rows:
            continue
        if rows % 8 and d != b:
            continue
        steps = b // d
        if steps >= 4:
            best4 = d
        if steps >= 2:
            best2 = d
        best1 = d
    for cand in (best4, best2, best1):
        if cand is not None:
            return cand
    return b


def gat_forward(h_2d, h_3d, W, a, *, alpha: float, block_b: int | None = None,
                compute_dtype=None):
    """Pallas-backed GraphAttentionLayer.forward (default flags).

    compute_dtype: dtype of the streamed inputs / weights fed to the MXU.
      None (default) keeps the input dtype (f32 -> exact module semantics).
      jnp.bfloat16 halves the dominant HBM read stream and uses the native
      bf16 MXU on v6e/v7x; accumulation stays f32.
    """
    b, n1, din = h_3d.shape
    b2, n2, din2 = h_2d.shape
    assert b2 == b and din2 == din, "h_2d / h_3d shape mismatch"
    assert n2 % n1 == 0, "n2 must be a multiple of n1"
    num_leaf = n2 // n1
    dout = W.shape[1]
    assert W.shape[0] == din and a.shape == (2 * dout, 1)

    if compute_dtype is None:
        compute_dtype = h_3d.dtype
    if block_b is None:
        block_b = _pick_block_b(b, n1)
    if b % block_b:
        raise ValueError(f"block_b={block_b} must divide batch b={b}")
    nsteps = b // block_b
    mrows = block_b * n1

    # Free (row-major) views -- no extra HBM pass.  Row = (batch, node); all
    # num_leaf leaf feature vectors of that node sit contiguously on lanes.
    h2v = h_2d.reshape(b * n1, num_leaf * din).astype(compute_dtype)
    h3v = h_3d.reshape(b * n1, din).astype(compute_dtype)

    # Tiny grid-invariant constants, built in f32 then cast once.
    Wf = W.astype(jnp.float32)
    a1 = a[:dout, :].astype(jnp.float32)       # (dout, 1)
    a2 = a[dout:, :].astype(jnp.float32)       # (dout, 1)
    eye_l = jnp.eye(num_leaf, dtype=jnp.float32)
    wb = jnp.kron(eye_l, Wf)                   # (L*din, L*dout)  block-diag(W)
    wa1 = jnp.kron(eye_l, Wf @ a1)             # (L*din, L)       block-diag(W @ a1)
    wb_aug = jnp.concatenate([wb, wa1], axis=1).astype(compute_dtype)   # (L*din, L*dout+L)
    w_aug = jnp.concatenate([Wf, Wf @ a2], axis=1).astype(compute_dtype)  # (din, dout+1)

    kernel = functools.partial(_gat_kernel, num_leaf=num_leaf, dout=dout,
                               alpha=float(alpha))

    out2d = pl.pallas_call(
        kernel,
        out_shape=jax.ShapeDtypeStruct((b * n1, dout), jnp.float32),
        grid_spec=pltpu.PrefetchScalarGridSpec(
            num_scalar_prefetch=0,
            grid=(nsteps,),
            in_specs=[
                pl.BlockSpec((mrows, num_leaf * din), lambda i: (i, 0)),
                pl.BlockSpec((mrows, din), lambda i: (i, 0)),
                # Grid-invariant operands (index_map always (0,0)); left on the
                # default pipeline_mode -- the extra buffer is ~70 KiB.
                pl.BlockSpec((num_leaf * din, num_leaf * dout + num_leaf),
                             lambda i: (0, 0)),
                pl.BlockSpec((din, dout + 1), lambda i: (0, 0)),
            ],
            out_specs=pl.BlockSpec((mrows, dout), lambda i: (i, 0)),
        ),
        compiler_params=pltpu.CompilerParams(
            dimension_semantics=("parallel",)),
    )(h2v, h3v, wb_aug, w_aug)

    return out2d.reshape(b, n1, dout)


def _ref_forward(h_2d, h_3d, W, a, alpha):
    """Pure-JAX reference mirroring the PyTorch forward (default flags)."""
    b, n1, din = h_3d.shape
    _, n2, _ = h_2d.shape
    num_leaf = n2 // n1
    dout = W.shape[1]
    wh_2d = h_2d @ W
    wh_3d = h_3d @ W
    s2 = (wh_2d @ a[:dout]).reshape(b, n1, num_leaf, 1)
    s3 = wh_3d @ a[dout:]                                    # (b, n1, 1)
    s2 = jnp.concatenate([s3[:, :, None, :], s2], axis=2)    # include_self
    e = s3[:, :, None, :] + s2
    e = jnp.where(e > 0, e, alpha * e)
    att = jax.nn.softmax(e, axis=2)
    wh_2d_r = wh_2d.reshape(b, n1, num_leaf, dout)
    wh = jnp.concatenate([wh_3d[:, :, None, :], wh_2d_r], axis=2)
    hp = jnp.einsum('bncd,bncq->bnq', att, wh)
    return jax.nn.elu(hp)


if __name__ == "__main__":
    # Small shapes consistent with the module's forward.
    b, n1, num_leaf = 2, 8, 4
    n2 = n1 * num_leaf
    in_features, out_features = 32, 32
    alpha = 0.2

    key = jax.random.PRNGKey(0)
    k_h2, k_h3, k_w, k_a = jax.random.split(key, 4)

    h_2d = jax.random.normal(k_h2, (b, n2, in_features), dtype=jnp.float32)
    h_3d = jax.random.normal(k_h3, (b, n1, in_features), dtype=jnp.float32)

    # xavier_normal_(gain=1.414): std = gain * sqrt(2 / (fan_in + fan_out))
    w_std = 1.414 * (2.0 / (in_features + out_features)) ** 0.5
    W = w_std * jax.random.normal(k_w, (in_features, out_features), dtype=jnp.float32)
    a_std = 1.414 * (2.0 / (2 * out_features + 1)) ** 0.5
    a = a_std * jax.random.normal(k_a, (2 * out_features, 1), dtype=jnp.float32)

    ref = _ref_forward(h_2d, h_3d, W, a, alpha)

    # 1) Default (f32, auto block): exact module semantics.
    out = jax.block_until_ready(gat_forward(h_2d, h_3d, W, a, alpha=alpha))
    assert out.shape == (b, n1, out_features)
    assert jnp.allclose(out, ref, atol=2e-4, rtol=2e-4), \
        f"f32 max abs err {float(jnp.max(jnp.abs(out - ref)))}"

    # 2) Multi-step grid path (explicit small block_b) to exercise the pipeline.
    out_ms = jax.block_until_ready(
        gat_forward(h_2d, h_3d, W, a, alpha=alpha, block_b=1))
    assert jnp.allclose(out_ms, ref, atol=2e-4, rtol=2e-4), \
        f"multi-step max abs err {float(jnp.max(jnp.abs(out_ms - ref)))}"

    # 3) bf16 streamed-input path (v6e/v7x fast path; f32 accumulation).
    out_bf = jax.block_until_ready(
        gat_forward(h_2d, h_3d, W, a, alpha=alpha, compute_dtype=jnp.bfloat16))
    assert jnp.allclose(out_bf, ref, atol=5e-2, rtol=5e-2), \
        f"bf16 max abs err {float(jnp.max(jnp.abs(out_bf - ref)))}"

    print("KERNEL_OK")
</pallas_src>

<mosaic_0001>
module attributes {stable_mosaic.version = 11 : i64} {
  func.func @_gat_kernel(%arg0: i32, %arg1: memref<16x128xf32, #tpu.memory_space<vmem>>, %arg2: memref<16x32xf32, #tpu.memory_space<vmem>>, %arg3: memref<128x132xf32, #tpu.memory_space<vmem>>, %arg4: memref<32x33xf32, #tpu.memory_space<vmem>>, %arg5: memref<16x32xf32, #tpu.memory_space<vmem>>) attributes {dimension_semantics = [#tpu.dimension_semantics<parallel>], iteration_bounds = array<i64: 1>, scalar_prefetch = 0 : i64, scratch_operands = 0 : i64, tpu.core_type = #tpu.core_type<tc>, window_params = [{transform_indices = @transform_0, window_bounds = array<i64: 16, 128>}, {transform_indices = @transform_1, window_bounds = array<i64: 16, 32>}, {pipeline_mode = #tpu.pipeline_mode<synchronous>, transform_indices = @transform_2, window_bounds = array<i64: 128, 132>}, {pipeline_mode = #tpu.pipeline_mode<synchronous>, transform_indices = @transform_3, window_bounds = array<i64: 32, 33>}, {transform_indices = @transform_4, window_bounds = array<i64: 16, 32>}]} {
    %c0 = arith.constant 0 : index
    %c0_0 = arith.constant 0 : index
    %0 = vector.load %arg1[%c0, %c0_0] : memref<16x128xf32, #tpu.memory_space<vmem>>, vector<16x128xf32>
    %c0_1 = arith.constant 0 : index
    %c0_2 = arith.constant 0 : index
    %1 = vector.load %arg3[%c0_1, %c0_2] : memref<128x132xf32, #tpu.memory_space<vmem>>, vector<128x132xf32>
    %cst = arith.constant dense<0.000000e+00> : vector<16x132xf32>
    %2 = tpu.matmul %0, %1, %cst {dimension_numbers = #tpu.dot_dimension_numbers<[1], [0], [0], [1], [0, 0, 1, 1], [], []>} : vector<16x128xf32>, vector<128x132xf32>, vector<16x132xf32> -> vector<16x132xf32>
    %c0_3 = arith.constant 0 : index
    %c0_4 = arith.constant 0 : index
    %3 = vector.load %arg2[%c0_3, %c0_4] : memref<16x32xf32, #tpu.memory_space<vmem>>, vector<16x32xf32>
    %c0_5 = arith.constant 0 : index
    %c0_6 = arith.constant 0 : index
    %4 = vector.load %arg4[%c0_5, %c0_6] : memref<32x33xf32, #tpu.memory_space<vmem>>, vector<32x33xf32>
    %cst_7 = arith.constant dense<0.000000e+00> : vector<16x33xf32>
    %5 = tpu.matmul %3, %4, %cst_7 {dimension_numbers = #tpu.dot_dimension_numbers<[1], [0], [0], [1], [0, 0, 1, 1], [], []>} : vector<16x32xf32>, vector<32x33xf32>, vector<16x33xf32> -> vector<16x33xf32>
    %6 = vector.extract_strided_slice %2 {offsets = [0, 0], sizes = [16, 128], strides = [1, 1]} : vector<16x132xf32> to vector<16x128xf32>
    %7 = vector.extract_strided_slice %2 {offsets = [0, 128], sizes = [16, 4], strides = [1, 1]} : vector<16x132xf32> to vector<16x4xf32>
    %8 = vector.extract_strided_slice %5 {offsets = [0, 0], sizes = [16, 32], strides = [1, 1]} : vector<16x33xf32> to vector<16x32xf32>
    %9 = vector.extract_strided_slice %5 {offsets = [0, 32], sizes = [16, 1], strides = [1, 1]} : vector<16x33xf32> to vector<16x1xf32>
    %10 = vector.broadcast %9 : vector<16x1xf32> to vector<16x4xf32>
    %11 = arith.addf %10, %7 : vector<16x4xf32>
    %12 = arith.addf %9, %9 : vector<16x1xf32>
    %cst_8 = arith.constant 0.000000e+00 : f32
    %13 = vector.broadcast %cst_8 : f32 to vector<16x4xf32>
    %14 = arith.cmpf ogt, %11, %13 : vector<16x4xf32>
    %cst_9 = arith.constant 2.000000e-01 : f32
    %15 = vector.broadcast %cst_9 : f32 to vector<16x4xf32>
    %16 = arith.mulf %15, %11 : vector<16x4xf32>
    %17 = arith.select %14, %11, %16 : vector<16x4xi1>, vector<16x4xf32>
    %cst_10 = arith.constant 0.000000e+00 : f32
    %18 = vector.broadcast %cst_10 : f32 to vector<16x1xf32>
    %19 = arith.cmpf ogt, %12, %18 : vector<16x1xf32>
    %cst_11 = arith.constant 2.000000e-01 : f32
    %20 = vector.broadcast %cst_11 : f32 to vector<16x1xf32>
    %21 = arith.mulf %20, %12 : vector<16x1xf32>
    %22 = arith.select %19, %12, %21 : vector<16x1xi1>, vector<16x1xf32>
    %cst_12 = arith.constant dense<0xFF800000> : vector<16xf32>
    %23 = vector.multi_reduction <maximumf>, %17, %cst_12 [1] : vector<16x4xf32> to vector<16xf32>
    %24 = vector.shape_cast %23 : vector<16xf32> to vector<16x1xf32>
    %25 = arith.maximumf %24, %22 : vector<16x1xf32>
    %26 = vector.broadcast %25 : vector<16x1xf32> to vector<16x4xf32>
    %27 = arith.subf %17, %26 : vector<16x4xf32>
    %28 = math.exp %27 : vector<16x4xf32>
    %29 = arith.subf %22, %25 : vector<16x1xf32>
    %30 = math.exp %29 : vector<16x1xf32>
    %cst_13 = arith.constant dense<0.000000e+00> : vector<16xf32>
    %31 = vector.multi_reduction <add>, %28, %cst_13 [1] : vector<16x4xf32> to vector<16xf32>
    %32 = vector.shape_cast %31 : vector<16xf32> to vector<16x1xf32>
    %33 = arith.addf %30, %32 : vector<16x1xf32>
    %34 = tpu.reciprocal %33 {approx = true} : vector<16x1xf32> -> vector<16x1xf32>
    %35 = arith.mulf %33, %34 : vector<16x1xf32>
    %cst_14 = arith.constant 2.000000e+00 : f32
    %36 = vector.broadcast %cst_14 : f32 to vector<16x1xf32>
    %37 = arith.subf %36, %35 : vector<16x1xf32>
    %38 = arith.mulf %34, %37 : vector<16x1xf32>
    %39 = arith.mulf %30, %38 : vector<16x1xf32>
    %40 = vector.broadcast %38 : vector<16x1xf32> to vector<16x4xf32>
    %41 = arith.mulf %28, %40 : vector<16x4xf32>
    %42 = vector.broadcast %39 : vector<16x1xf32> to vector<16x32xf32>
    %43 = arith.mulf %42, %8 : vector<16x32xf32>
    %44 = vector.extract_strided_slice %41 {offsets = [0, 0], sizes = [16, 1], strides = [1, 1]} : vector<16x4xf32> to vector<16x1xf32>
    %45 = vector.extract_strided_slice %6 {offsets = [0, 0], sizes = [16, 32], strides = [1, 1]} : vector<16x128xf32> to vector<16x32xf32>
    %46 = vector.broadcast %44 : vector<16x1xf32> to vector<16x32xf32>
    %47 = arith.mulf %46, %45 : vector<16x32xf32>
    %48 = vector.extract_strided_slice %41 {offsets = [0, 1], sizes = [16, 1], strides = [1, 1]} : vector<16x4xf32> to vector<16x1xf32>
    %49 = vector.extract_strided_slice %6 {offsets = [0, 32], sizes = [16, 32], strides = [1, 1]} : vector<16x128xf32> to vector<16x32xf32>
    %50 = vector.broadcast %48 : vector<16x1xf32> to vector<16x32xf32>
    %51 = arith.mulf %50, %49 : vector<16x32xf32>
    %52 = vector.extract_strided_slice %41 {offsets = [0, 2], sizes = [16, 1], strides = [1, 1]} : vector<16x4xf32> to vector<16x1xf32>
    %53 = vector.extract_strided_slice %6 {offsets = [0, 64], sizes = [16, 32], strides = [1, 1]} : vector<16x128xf32> to vector<16x32xf32>
    %54 = vector.broadcast %52 : vector<16x1xf32> to vector<16x32xf32>
    %55 = arith.mulf %54, %53 : vector<16x32xf32>
    %56 = vector.extract_strided_slice %41 {offsets = [0, 3], sizes = [16, 1], strides = [1, 1]} : vector<16x4xf32> to vector<16x1xf32>
    %57 = vector.extract_strided_slice %6 {offsets = [0, 96], sizes = [16, 32], strides = [1, 1]} : vector<16x128xf32> to vector<16x32xf32>
    %58 = vector.broadcast %56 : vector<16x1xf32> to vector<16x32xf32>
    %59 = arith.mulf %58, %57 : vector<16x32xf32>
    %60 = arith.addf %43, %47 : vector<16x32xf32>
    %61 = arith.addf %51, %55 : vector<16x32xf32>
    %62 = arith.addf %60, %61 : vector<16x32xf32>
    %63 = arith.addf %62, %59 : vector<16x32xf32>
    %cst_15 = arith.constant 0.000000e+00 : f32
    %64 = vector.broadcast %cst_15 : f32 to vector<16x32xf32>
    %65 = arith.cmpf ogt, %63, %64 : vector<16x32xf32>
    %cst_16 = arith.constant 0.000000e+00 : f32
    %66 = vector.broadcast %cst_16 : f32 to vector<16x32xf32>
    %67 = arith.minimumf %63, %66 : vector<16x32xf32>
    %68 = math.exp %67 : vector<16x32xf32>
    %cst_17 = arith.constant 1.000000e+00 : f32
    %69 = vector.broadcast %cst_17 : f32 to vector<16x32xf32>
    %70 = arith.subf %68, %69 : vector<16x32xf32>
    %71 = arith.select %65, %63, %70 : vector<16x32xi1>, vector<16x32xf32>
    %c0_18 = arith.constant 0 : index
    %c0_19 = arith.constant 0 : index
    %72 = vector.load %arg5[%c0_18, %c0_19] : memref<16x32xf32, #tpu.memory_space<vmem>>, vector<16x32xf32>
    tpu.vector_store %arg5[%c0_18, %c0_19], %71 {strides = array<i32>} : memref<16x32xf32, #tpu.memory_space<vmem>>, vector<16x32xf32>,
    return
  }
  func.func @transform_0(%arg0: i32) -> (i32, i32) {
    %c0_i32 = arith.constant 0 : i32
    %c0_i32_0 = arith.constant 0 : i32
    return %arg0, %c0_i32 : i32, i32
  }
  func.func @transform_1(%arg0: i32) -> (i32, i32) {
    %c0_i32 = arith.constant 0 : i32
    %c0_i32_0 = arith.constant 0 : i32
    return %arg0, %c0_i32 : i32, i32
  }
  func.func @transform_2(%arg0: i32) -> (i32, i32) {
    %c0_i32 = arith.constant 0 : i32
    %c0_i32_0 = arith.constant 0 : i32
    %c0_i32_1 = arith.constant 0 : i32
    return %c0_i32, %c0_i32_0 : i32, i32
  }
  func.func @transform_3(%arg0: i32) -> (i32, i32) {
    %c0_i32 = arith.constant 0 : i32
    %c0_i32_0 = arith.constant 0 : i32
    %c0_i32_1 = arith.constant 0 : i32
    return %c0_i32, %c0_i32_0 : i32, i32
  }
  func.func @transform_4(%arg0: i32) -> (i32, i32) {
    %c0_i32 = arith.constant 0 : i32
    %c0_i32_0 = arith.constant 0 : i32
    return %arg0, %c0_i32 : i32, i32
  }
}

</mosaic_0001>

<llo_original>
// kernel: tpu_custom_call.1
$region0: #{tpu_custom_call.1}
  #allocation0 [shape = 'u32[]', space=smem, size = 0x4, offset = 0x4, fixed_abs, tag = 'smem constant byte address 0x4 - core index']
  #allocation1 [shape = 'u32[72,128]{1,0:T(1,128)}', space=vmem, size = 0x9000, scoped, tag = 'internal scratch']
  %s0 = inlined_call_operand.vmem [shape: f32[16,128], index: 0, kind: input, shape index: {}]
  %s1 = inlined_call_operand.vmem [shape: f32[16,32], index: 1, kind: input, shape index: {}]
  %s2 = inlined_call_operand.vmem [shape: f32[128,132], index: 2, kind: input, shape index: {}]
  %s3 = inlined_call_operand.vmem [shape: f32[32,33], index: 3, kind: input, shape index: {}]
  %s4 = inlined_call_operand.hbm [shape: f32[16,32], index: 4, kind: output, shape index: {}]
  %s5 = sld [smem:[#allocation0]]
  $region26: #{tpu_custom_call.1} parent=0
    _
  %s7 = ssub.s32 1, %s5
  %s8 = scalar_select 0, %s7, %s5
  $region1: #{tpu_custom_call.1} parent=0
    #allocation2 [shape = 'u8[8192]{0}', space=vmem, size = 0x2000, scoped, tag = 'output window, operand 0, single buffered']
    #allocation3 [shape = 's32[1]{0}', space=sflag, size = 0x4, scoped, tag = 'scoped memory for tpu_custom_call.1']
    %9 = vsyncpa [#allocation3], 0
    // Predicated region
    $region2: #{tpu_custom_call.1} parent=1 // pred_check
      _
    $region3: #{tpu_custom_call.1} parent=1 // pred_check_branch
      %11 = sbr.rel (0) target = $region5
    $region4: #{tpu_custom_call.1} parent=1 // pred_region
      _
    $region5: #{tpu_custom_call.1} parent=1 // pred_fallthru
      _
    // Predicated region
    $region6: #{tpu_custom_call.1} parent=1 // pred_check
      _
    $region7: #{tpu_custom_call.1} parent=1 // pred_check_branch
      %13 = sbr.rel (0) target = $region9
    $region8: #{tpu_custom_call.1} parent=1 // pred_region
      _
    $region9: #{tpu_custom_call.1} parent=1 // pred_fallthru
      _
    // Predicated region
    $region10: #{tpu_custom_call.1} parent=1 // pred_check
      _
    $region11: #{tpu_custom_call.1} parent=1 // pred_check_branch
      %15 = sbr.rel (0) target = $region13
    $region12: #{tpu_custom_call.1} parent=1 // pred_region
      _
    $region13: #{tpu_custom_call.1} parent=1 // pred_fallthru
      _
    // Predicated region
    $region14: #{tpu_custom_call.1} parent=1 // pred_check
      _
    $region15: #{tpu_custom_call.1} parent=1 // pred_check_branch
      %17 = sbr.rel (0) target = $region17
    $region16: #{tpu_custom_call.1} parent=1 // pred_region
      _
    $region17: #{tpu_custom_call.1} parent=1 // pred_fallthru
      _
    %v18 = vld [vmem:[%s0] sm:$0xff]
    %v19 = vld [vmem:[%s0 + $0x8] sm:$0xff]
    %v20 = vld [vmem:[%s2] sm:$0xff]
    %v21 = vld [vmem:[%s2 + $0x8] sm:$0xff]
    %v22 = vld [vmem:[%s2 + $0x10] sm:$0xff]
    %v23 = vld [vmem:[%s2 + $0x18] sm:$0xff]
    %v24 = vld [vmem:[%s2 + $0x20] sm:$0xff]
    %v25 = vld [vmem:[%s2 + $0x28] sm:$0xff]
    %v26 = vld [vmem:[%s2 + $0x30] sm:$0xff]
    %v27 = vld [vmem:[%s2 + $0x38] sm:$0xff]
    %v28 = vld [vmem:[%s2 + $0x40] sm:$0xff]
    %v29 = vld [vmem:[%s2 + $0x48] sm:$0xff]
    %v30 = vld [vmem:[%s2 + $0x50] sm:$0xff]
    %v31 = vld [vmem:[%s2 + $0x58] sm:$0xff]
    %v32 = vld [vmem:[%s2 + $0x60] sm:$0xff]
    %v33 = vld [vmem:[%s2 + $0x68] sm:$0xff]
    %v34 = vld [vmem:[%s2 + $0x70] sm:$0xff]
    %v35 = vld [vmem:[%s2 + $0x78] sm:$0xff]
    %v36 = vld [vmem:[%s2 + $0x80] sm:$0xff]
    %v37 = vld [vmem:[%s2 + $0x88] sm:$0xff]
    %v38 = vld [vmem:[%s2 + $0x90] sm:$0xff]
    %v39 = vld [vmem:[%s2 + $0x98] sm:$0xff]
    %v40 = vld [vmem:[%s2 + $0xa0] sm:$0xff]
    %v41 = vld [vmem:[%s2 + $0xa8] sm:$0xff]
    %v42 = vld [vmem:[%s2 + $0xb0] sm:$0xff]
    %v43 = vld [vmem:[%s2 + $0xb8] sm:$0xff]
    %v44 = vld [vmem:[%s2 + $0xc0] sm:$0xff]
    %v45 = vld [vmem:[%s2 + $0xc8] sm:$0xff]
    %v46 = vld [vmem:[%s2 + $0xd0] sm:$0xff]
    %v47 = vld [vmem:[%s2 + $0xd8] sm:$0xff]
    %v48 = vld [vmem:[%s2 + $0xe0] sm:$0xff]
    %v49 = vld [vmem:[%s2 + $0xe8] sm:$0xff]
    %v50 = vld [vmem:[%s2 + $0xf0] sm:$0xff]
    %v51 = vld [vmem:[%s2 + $0xf8] sm:$0xff]
    %52 = vmatpush.msra.mxu0 %v50
    %53 = vmatpush.msra.mxu0 %v48
    %54 = vmatpush.msra.mxu0 %v46
    %55 = vmatpush.msra.mxu0 %v44
    %56 = vmatpush.msra.mxu0 %v42
    %57 = vmatpush.msra.mxu0 %v40
    %58 = vmatpush.msra.mxu0 %v38
    %59 = vmatpush.msra.mxu0 %v36
    %60 = vmatpush.msra.mxu0 %v34
    %61 = vmatpush.msra.mxu0 %v32
    %62 = vmatpush.msra.mxu0 %v30
    %63 = vmatpush.msra.mxu0 %v28
    %64 = vmatpush.msra.mxu0 %v26
    %65 = vmatpush.msra.mxu0 %v24
    %66 = vmatpush.msra.mxu0 %v22
    %67 = vmatpush.msra.mxu0 %v20
    %68 = vmatmul.f32.gmra.mxu0 %v18
    %v69 = vpop.f32.mrf.mxu0
    %v70 = vadd.f32 0.0, %v69
    %71 = vmatmul.f32.gmra.mxu0 %v19
    %v72 = vpop.f32.mrf.mxu0
    %v73 = vadd.f32 0.0, %v72
    %74 = vdwg.mxu0
    %75 = vmatpush.msra.mxu0 %v51
    %76 = vmatpush.msra.mxu0 %v49
    %77 = vmatpush.msra.mxu0 %v47
    %78 = vmatpush.msra.mxu0 %v45
    %79 = vmatpush.msra.mxu0 %v43
    %80 = vmatpush.msra.mxu0 %v41
    %81 = vmatpush.msra.mxu0 %v39
    %82 = vmatpush.msra.mxu0 %v37
    %83 = vmatpush.msra.mxu0 %v35
    %84 = vmatpush.msra.mxu0 %v33
    %85 = vmatpush.msra.mxu0 %v31
    %86 = vmatpush.msra.mxu0 %v29
    %87 = vmatpush.msra.mxu0 %v27
    %88 = vmatpush.msra.mxu0 %v25
    %89 = vmatpush.msra.mxu0 %v23
    %90 = vmatpush.msra.mxu0 %v21
    %91 = vmatmul.f32.gmra.mxu0 %v18
    %v92 = vpop.f32.mrf.mxu0
    %v93 = vadd.f32 0.0, %v92
    %94 = vmatmul.f32.gmra.mxu0 %v19
    %v95 = vpop.f32.mrf.mxu0
    %v96 = vadd.f32 0.0, %v95
    %97 = vdwg.mxu0
    %v98 = vld [vmem:[%s1] sm:$0xff]
    %v99 = vld [vmem:[%s1 + $0x8] sm:$0xff]
    %v100 = vld [vmem:[%s3] sm:$0xff]
    %v101 = vld [vmem:[%s3 + $0x8] sm:$0xff]
    %v102 = vld [vmem:[%s3 + $0x10] sm:$0xff]
    %v103 = vld [vmem:[%s3 + $0x18] sm:$0xff]
    %vm104 = vcmask 261120
    %v106 = vsel %vm104, %v98, 0
    %v109 = vsel %vm104, %v99, 0
    %111 = vmatpush.msra.mxu0 0.0
    %112 = vmatpush.msra.mxu0 0.0
    %113 = vmatpush.msra.mxu0 0.0
    %114 = vmatpush.msra.mxu0 0.0
    %115 = vmatpush.msra.mxu0 0.0
    %116 = vmatpush.msra.mxu0 0.0
    %117 = vmatpush.msra.mxu0 0.0
    %118 = vmatpush.msra.mxu0 0.0
    %119 = vmatpush.msra.mxu0 0.0
    %120 = vmatpush.msra.mxu0 0.0
    %121 = vmatpush.msra.mxu0 0.0
    %122 = vmatpush.msra.mxu0 0.0
    %123 = vmatpush.msra.mxu0 %v103
    %124 = vmatpush.msra.mxu0 %v102
    %125 = vmatpush.msra.mxu0 %v101
    %126 = vmatpush.msra.mxu0 %v100
    %127 = vmatmul.f32.gmra.mxu0 %v106
    %v128 = vpop.f32.mrf.mxu0
    %v129 = vadd.f32 0.0, %v128
    %130 = vmatmul.f32.gmra.mxu0 %v109
    %v131 = vpop.f32.mrf.mxu0
    %v132 = vadd.f32 0.0, %v131
    %133 = vdwg.mxu0
    %135 = vset.pattern.permute.xlu0 32
    %136 = vperm.xlu0 %135, %v129
    %v137 = vpop.permute.xlu0 %136
    %140 = vset.pattern.permute.xlu0 32
    %141 = vperm.xlu0 %140, %v132
    %v142 = vpop.permute.xlu0 %141
    %v144 = vadd.f32 %v137, %v93
    %v145 = vadd.f32 %v142, %v96
    %v146 = vadd.f32 %v129, %v129
    %v147 = vadd.f32 %v132, %v132
    %vm148 = vcmp.gt.f32.partialorder %v144, 0.0
    %vm149 = vcmp.gt.f32.partialorder %v145, 0.0
    %v150 = vmul.f32 %v144, 0.2
    %v151 = vmul.f32 %v145, 0.2
    %v152 = vsel %vm148, %v144, %v150
    %v153 = vsel %vm149, %v145, %v151
    %vm154 = vcmp.gt.f32.partialorder %v146, 0.0
    %vm155 = vcmp.gt.f32.partialorder %v147, 0.0
    %v156 = vmul.f32 %v146, 0.2
    %v157 = vmul.f32 %v147, 0.2
    %v158 = vsel %vm154, %v146, %v156
    %v159 = vsel %vm155, %v147, %v157
    %vm160 = vcmask 31744
    %v161 = vsel %vm160, %v152, -inf
    %162 = vmax.xlane.f32.xlu0 %v161
    %v163 = vpop.xlane.xlu0 %162
    %v164 = vsel %vm160, %v153, -inf
    %165 = vmax.xlane.f32.xlu0 %v164
    %v166 = vpop.xlane.xlu0 %165
    %v167 = vmax.f32 %v163, %v158
    %v168 = vmax.f32 %v166, %v159
    %170 = vset.pattern.permute.xlu0 32
    %171 = vperm.xlu0 %170, %v167
    %v172 = vpop.permute.xlu0 %171
    %175 = vset.pattern.permute.xlu0 32
    %176 = vperm.xlu0 %175, %v168
    %v177 = vpop.permute.xlu0 %176
    %v179 = vsub.f32 %v152, %v172
    %v180 = vsub.f32 %v153, %v177
    %v181 = vmul.f32 %v179, 1.442695
    %v182 = vpow.pop %v181
    %v183 = vmul.f32 %v180, 1.442695
    %v184 = vpow.pop %v183
    %v185 = vsub.f32 %v158, %v167
    %v186 = vsub.f32 %v159, %v168
    %v187 = vmul.f32 %v185, 1.442695
    %v188 = vpow.pop %v187
    %v189 = vmul.f32 %v186, 1.442695
    %v190 = vpow.pop %v189
    %v191 = vsel %vm160, %v182, 0.0
    %192 = vadd.xlane.f32.xlu0 %v191
    %v193 = vpop.xlane.xlu0 %192
    %v194 = vsel %vm160, %v184, 0.0
    %195 = vadd.xlane.f32.xlu0 %v194
    %v196 = vpop.xlane.xlu0 %195
    %v197 = vadd.f32 %v188, %v193
    %v198 = vadd.f32 %v190, %v196
    %v199 = vrcp.pop %v197
    %v200 = vrcp.pop %v198
    %v201 = vmul.f32 %v197, %v199
    %v202 = vmul.f32 %v198, %v200
    %v203 = vsub.f32 2.0, %v201
    %v204 = vsub.f32 2.0, %v202
    %v205 = vmul.f32 %v199, %v203
    %v206 = vmul.f32 %v200, %v204
    %v207 = vmul.f32 %v188, %v205
    %v208 = vmul.f32 %v190, %v206
    %210 = vset.pattern.permute.xlu0 32
    %211 = vperm.xlu0 %210, %v205
    %v212 = vpop.permute.xlu0 %211
    %215 = vset.pattern.permute.xlu0 32
    %216 = vperm.xlu0 %215, %v206
    %v217 = vpop.permute.xlu0 %216
    %v219 = vmul.f32 %v182, %v212
    %v220 = vmul.f32 %v184, %v217
    %222 = vset.pattern.permute.xlu0 32
    %223 = vperm.xlu0 %222, %v207
    %v224 = vpop.permute.xlu0 %223
    %227 = vset.pattern.permute.xlu0 32
    %228 = vperm.xlu0 %227, %v208
    %v229 = vpop.permute.xlu0 %228
    %v231 = vmul.f32 %v224, %v129
    %v232 = vmul.f32 %v229, %v132
    %234 = vset.pattern.permute.xlu0 0
    %235 = vperm.xlu0 %234, %v219
    %v236 = vpop.permute.xlu0 %235
    %239 = vset.pattern.permute.xlu0 0
    %240 = vperm.xlu0 %239, %v220
    %v241 = vpop.permute.xlu0 %240
    %v243 = vmul.f32 %v236, %v70
    %v244 = vmul.f32 %v241, %v73
    %245 = vset.pattern.permute.xlu0 1
    %246 = vperm.xlu0 %245, %v219
    %v247 = vpop.permute.xlu0 %246
    %249 = vset.pattern.permute.xlu0 1
    %250 = vperm.xlu0 %249, %v220
    %v251 = vpop.permute.xlu0 %250
    %v253 = vmul.f32 %v247, %v70
    %v254 = vmul.f32 %v251, %v73
    %255 = vset.pattern.permute.xlu0 2
    %256 = vperm.xlu0 %255, %v219
    %v257 = vpop.permute.xlu0 %256
    %259 = vset.pattern.permute.xlu0 2
    %260 = vperm.xlu0 %259, %v220
    %v261 = vpop.permute.xlu0 %260
    %v263 = vmul.f32 %v257, %v70
    %v264 = vmul.f32 %v261, %v73
    %265 = vset.pattern.permute.xlu0 3
    %266 = vperm.xlu0 %265, %v219
    %v267 = vpop.permute.xlu0 %266
    %269 = vset.pattern.permute.xlu0 3
    %270 = vperm.xlu0 %269, %v220
    %v271 = vpop.permute.xlu0 %270
    %v273 = vmul.f32 %v267, %v70
    %v274 = vmul.f32 %v271, %v73
    %v275 = vadd.f32 %v231, %v243
    %v276 = vadd.f32 %v232, %v244
    %279 = vrot.lane.b32.xlu0 %v263, 96
    %v280 = vpop.permute.xlu0 %279
    %281 = vrot.lane.b32.xlu0 %v264, 96
    %v282 = vpop.permute.xlu0 %281
    %v285 = vadd.f32 %v253, %v280
    %v286 = vadd.f32 %v254, %v282
    %289 = vrot.lane.b32.xlu0 %v285, 96
    %v290 = vpop.permute.xlu0 %289
    %291 = vrot.lane.b32.xlu0 %v286, 96
    %v292 = vpop.permute.xlu0 %291
    %v295 = vadd.f32 %v275, %v290
    %v296 = vadd.f32 %v276, %v292
    %299 = vrot.lane.b32.xlu0 %v273, 32
    %v300 = vpop.permute.xlu0 %299
    %301 = vrot.lane.b32.xlu0 %v274, 32
    %v302 = vpop.permute.xlu0 %301
    %v305 = vadd.f32 %v295, %v300
    %v306 = vadd.f32 %v296, %v302
    %vm307 = vcmp.gt.f32.partialorder %v305, 0.0
    %vm308 = vcmp.gt.f32.partialorder %v306, 0.0
    %v309 = vmin.f32 %v305, 0.0
    %v310 = vmin.f32 %v306, 0.0
    %v311 = vmul.f32 %v309, 1.442695
    %v312 = vpow.pop %v311
    %v313 = vmul.f32 %v310, 1.442695
    %v314 = vpow.pop %v313
    %v315 = vsub.f32 %v312, 1.0
    %v316 = vsub.f32 %v314, 1.0
    %v317 = vsel %vm307, %v305, %v315
    %v318 = vsel %vm308, %v306, %v316
    %319 = vst.msk [vmem:[#allocation2] sm:$0xff] %vm104, %v317
    %320 = vst.msk [vmem:[#allocation2 + $0x8] sm:$0xff] %vm104, %v318
    // Predicated region
    $region18: #{tpu_custom_call.1} parent=1 // pred_check
      _
    $region19: #{tpu_custom_call.1} parent=1 // pred_check_branch
      %322 = sbr.rel (0) target = $region21
    $region20: #{tpu_custom_call.1} parent=1 // pred_region
      %324 = vsyncadd [#allocation3], 0
      %s325 = sshll.u32 [#allocation2], 4
      %s326 = int_to_ptr.vmem [resolvable:$true] %s325
      %s327 = sshll.u32 %s4, 4
      %s328 = int_to_ptr.hbm [resolvable:$true] %s327
      %333 = dma.vmem_to_hbm [thread:$0]  %s326, 256, %s328, [#allocation3], 128, 128, 8
    $region21: #{tpu_custom_call.1} parent=1 // pred_fallthru
      _
    // Predicated region
    $region22: #{tpu_custom_call.1} parent=1 // pred_check
      _
    $region23: #{tpu_custom_call.1} parent=1 // pred_check_branch
      %335 = sbr.rel (0) target = $region25
    $region24: #{tpu_custom_call.1} parent=1 // pred_region
      %337 = dma.done [#allocation3], 256
    $region25: #{tpu_custom_call.1} parent=1 // pred_fallthru
      _
    %338 = vsyncpa [#allocation3], 1

</llo_original>
